<compile_context>
chip_gen: v6e
topology: v6e:2x2x1
jax: 0.10.0
libtpu: 0.0.40
codegen_flags: <defaults>
</compile_context>

<pallas_src>
import functools

import jax
import jax.numpy as jnp
from jax.experimental import pallas as pl
from jax.experimental.pallas import tpu as pltpu

EPS = 1e-5                    # nn.InstanceNorm2d default eps
MXU_DTYPE = jnp.bfloat16      # MXU operand dtype (accumulation stays f32)


# ---------------- fused Pallas kernel ----------------

def resblock_kernel(x_ref, w1_ref, w2_ref, o_ref, *, H, W, mxu_dtype):
    # x_ref : (1, C, H*W) f32   flattened NCHW spatial (no pre-padding)
    # w*_ref: (3, C, 3C) bf16   3x3 weights grouped by kernel row kh; K = (kw, C_in)
    # o_ref : (1, C, H*W) f32
    # Requires H >= 2 and W >= 2 (reflect pad 1).
    L = H * W
    x = x_ref[0]                                          # (C, L) f32

    # Edge masks from an in-kernel iota (no index input / extra DMA).
    pos = jax.lax.broadcasted_iota(jnp.int32, (1, L), 1)
    if W & (W - 1) == 0:              # power-of-two W: avoid vector int div/mod
        col = jnp.bitwise_and(pos, W - 1)
    else:
        col = jax.lax.rem(pos, jnp.int32(W))
    left, right = col == 0, col == W - 1                  # (1, L) bool
    top, bot = pos < W, pos >= L - W

    def view(z, d):
        # out[:, p] = z[:, (p + d) % L]  (XLU lane rotate).  Wrapped lanes are
        # exactly the edge lanes replaced by the reflect fixes below.
        s = (-d) % L
        if s == 0:
            return z
        return pltpu.roll(z, shift=s, axis=1)

    def conv3x3(z, w_ref):
        # Reflect-pad-1 3x3 conv as 3 MXU matmuls: taps of one kernel row are
        # folded into the contraction dim (K = 3C), f32 accumulation.
        groups = []
        for kh in (-1, 0, 1):
            d = kh * W
            c_v = view(z, d)
            l_v = view(z, d - 1)
            r_v = view(z, d + 1)
            # Horizontal reflect fixes: col 0 reads col 1, col W-1 reads col W-2.
            l_f = jnp.where(left, r_v, l_v)
            r_f = jnp.where(right, l_v, r_v)
            # K order (kw=-1, kw=0, kw=+1) matches the (kw, C_in) weight layout;
            # the bf16 cast is fused into building the RHS group.
            groups.append(
                jnp.concatenate([l_f, c_v, r_f], axis=0).astype(mxu_dtype))
        # Vertical reflect fixes: row 0's kh=-1 taps read row 1 (the kh=+1 views),
        # row H-1's kh=+1 taps read row H-2 (the kh=-1 views).  Corners are
        # correct because the groups are already horizontally fixed.
        g_top = jnp.where(top, groups[2], groups[0])
        g_bot = jnp.where(bot, groups[0], groups[2])
        acc = jnp.dot(w_ref[0], g_top, preferred_element_type=jnp.float32)
        acc = acc + jnp.dot(w_ref[1], groups[1], preferred_element_type=jnp.float32)
        acc = acc + jnp.dot(w_ref[2], g_bot, preferred_element_type=jnp.float32)
        return acc                                        # (C, L) f32

    def inst_norm(y):
        # Stable two-pass instance norm over all H*W positions (lane reduce);
        # the centered tensor is reused for the output so pass 2 is ~free.
        m = jnp.mean(y, axis=-1, keepdims=True)
        yc = y - m
        v = jnp.mean(yc * yc, axis=-1, keepdims=True)
        return yc * jax.lax.rsqrt(v + EPS)

    # Conv2dBlock #1: conv + InstanceNorm + ReLU (conv bias cancelled by IN).
    h = jnp.maximum(inst_norm(conv3x3(x, w1_ref)), 0.0)
    # Conv2dBlock #2: conv + InstanceNorm (no activation) + fused residual add.
    o_ref[0] = inst_norm(conv3x3(h, w2_ref)) + x


# ---------------- JAX wrapper ----------------

def resblock_pallas(x, w1, b1, w2, b2, *, mxu_dtype=MXU_DTYPE):
    # b1/b2 accepted for parity with nn.Conv2d(bias=True) but unused: the
    # immediately-following InstanceNorm2d(affine=False) cancels any per-channel
    # bias exactly.
    del b1, b2
    N, C, H, W = x.shape
    assert H >= 2 and W >= 2, "reflect pad 1 requires H, W >= 2"
    L = H * W
    xf = x.reshape(N, C, L).astype(jnp.float32)           # free reshape, no padding

    def regroup(w):
        # PyTorch OIHW (C,C,3,3) -> (3, C_out, 3*C_in): grouped by kernel row kh,
        # contraction dim ordered (kw, C_in) to match the kernel's RHS stacking.
        wt = jnp.transpose(w, (2, 0, 3, 1))               # (kh, C_out, kw, C_in)
        return wt.reshape(3, C, 3 * C).astype(mxu_dtype)

    kernel = functools.partial(resblock_kernel, H=H, W=W, mxu_dtype=mxu_dtype)
    out = pl.pallas_call(
        kernel,
        out_shape=jax.ShapeDtypeStruct((N, C, L), jnp.float32),
        grid=(N,),
        in_specs=[
            pl.BlockSpec((1, C, L), lambda n: (n, 0, 0)),
            # Constant-index weight blocks; TODO(synk): pl.Buffered(1) on v7x to
            # reclaim the unused second buffer at C=256.
            pl.BlockSpec((3, C, 3 * C), lambda n: (0, 0, 0)),
            pl.BlockSpec((3, C, 3 * C), lambda n: (0, 0, 0)),
        ],
        out_specs=pl.BlockSpec((1, C, L), lambda n: (n, 0, 0)),
        compiler_params=pltpu.CompilerParams(
            dimension_semantics=("parallel",),
            vmem_limit_bytes=64 * 1024 * 1024,
        ),
    )(xf, regroup(w1), regroup(w2))
    return out.reshape(N, C, H, W)                        # metadata-only reshape


# ---------------- pure-JAX reference ----------------

def ref_resblock(x, w1, b1, w2, b2, operand_dtype=None):
    """f32 reference. With operand_dtype=bf16 the conv operands are rounded the
    same way the kernel feeds the MXU (accumulation stays f32)."""
    if operand_dtype is None:
        rnd = lambda a: a
    else:
        rnd = lambda a: a.astype(operand_dtype).astype(jnp.float32)

    def conv(z, w, b):
        zp = jnp.pad(z, ((0, 0), (0, 0), (1, 1), (1, 1)), mode="reflect")
        y = jax.lax.conv_general_dilated(
            zp, w, (1, 1), "VALID", dimension_numbers=("NCHW", "OIHW", "NCHW"))
        return y + b[None, :, None, None]

    def inorm(y):
        m = y.mean(axis=(2, 3), keepdims=True)
        v = ((y - m) ** 2).mean(axis=(2, 3), keepdims=True)
        return (y - m) * jax.lax.rsqrt(v + EPS)

    h = jnp.maximum(inorm(conv(rnd(x), rnd(w1), b1)), 0.0)
    return inorm(conv(rnd(h), rnd(w2), b2)) + x


if __name__ == "__main__":
    N, C, H, W = 2, 8, 16, 16  # ResBlock(dim=8), nz=0
    key = jax.random.PRNGKey(0)
    kx, k1, kb1, k2, kb2 = jax.random.split(key, 5)
    scale = (9 * C) ** -0.5
    x = jax.random.normal(kx, (N, C, H, W), jnp.float32)
    w1 = jax.random.normal(k1, (C, C, 3, 3), jnp.float32) * scale
    b1 = jax.random.normal(kb1, (C,), jnp.float32) * 0.1
    w2 = jax.random.normal(k2, (C, C, 3, 3), jnp.float32) * scale
    b2 = jax.random.normal(kb2, (C,), jnp.float32) * 0.1

    out = jax.jit(resblock_pallas)(x, w1, b1, w2, b2)
    out = jax.block_until_ready(out)
    assert out.shape == x.shape

    ref_matched = ref_resblock(x, w1, b1, w2, b2, operand_dtype=MXU_DTYPE)
    ref_f32 = ref_resblock(x, w1, b1, w2, b2)
    err_m = float(jnp.max(jnp.abs(out - ref_matched)))
    err_f = float(jnp.max(jnp.abs(out - ref_f32)))
    assert err_m < 3e-2, f"max abs err vs matched-precision reference: {err_m}"
    assert err_f < 1.5e-1, f"max abs err vs f32 reference: {err_f}"
    print("KERNEL_OK")
</pallas_src>

<mosaic_0001>
module attributes {stable_mosaic.version = 11 : i64} {
  func.func @resblock_kernel(%arg0: i32, %arg1: memref<1x8x256xf32, #tpu.memory_space<vmem>>, %arg2: memref<3x8x24xbf16, #tpu.memory_space<vmem>>, %arg3: memref<3x8x24xbf16, #tpu.memory_space<vmem>>, %arg4: memref<1x8x256xf32, #tpu.memory_space<vmem>>) attributes {dimension_semantics = [#tpu.dimension_semantics<parallel>], iteration_bounds = array<i64: 2>, scalar_prefetch = 0 : i64, scratch_operands = 0 : i64, tpu.core_type = #tpu.core_type<tc>, window_params = [{transform_indices = @transform_0, window_bounds = array<i64: 1, 8, 256>}, {pipeline_mode = #tpu.pipeline_mode<synchronous>, transform_indices = @transform_1, window_bounds = array<i64: 3, 8, 24>}, {pipeline_mode = #tpu.pipeline_mode<synchronous>, transform_indices = @transform_2, window_bounds = array<i64: 3, 8, 24>}, {transform_indices = @transform_3, window_bounds = array<i64: 1, 8, 256>}]} {
    %c0 = arith.constant 0 : index
    %c0_0 = arith.constant 0 : index
    %c0_1 = arith.constant 0 : index
    %0 = vector.load %arg1[%c0, %c0_0, %c0_1] : memref<1x8x256xf32, #tpu.memory_space<vmem>>, vector<1x8x256xf32>
    %1 = vector.shape_cast %0 : vector<1x8x256xf32> to vector<8x256xf32>
    %2 = tpu.iota {dimensions = array<i32: 1>} : vector<1x256xi32>
    %c15_i32 = arith.constant 15 : i32
    %3 = vector.broadcast %c15_i32 : i32 to vector<1x256xi32>
    %4 = arith.andi %2, %3 : vector<1x256xi32>
    %c0_i32 = arith.constant 0 : i32
    %5 = vector.broadcast %c0_i32 : i32 to vector<1x256xi32>
    %6 = arith.cmpi eq, %4, %5 : vector<1x256xi32>
    %c15_i32_2 = arith.constant 15 : i32
    %7 = vector.broadcast %c15_i32_2 : i32 to vector<1x256xi32>
    %8 = arith.cmpi eq, %4, %7 : vector<1x256xi32>
    %c16_i32 = arith.constant 16 : i32
    %9 = vector.broadcast %c16_i32 : i32 to vector<1x256xi32>
    %10 = arith.cmpi slt, %2, %9 : vector<1x256xi32>
    %c240_i32 = arith.constant 240 : i32
    %11 = vector.broadcast %c240_i32 : i32 to vector<1x256xi32>
    %12 = arith.cmpi sge, %2, %11 : vector<1x256xi32>
    %c16_i32_3 = arith.constant 16 : i32
    %13 = tpu.dynamic_rotate %1 by %c16_i32_3 dim 1 : vector<8x256xf32>, i32 -> vector<8x256xf32>
    %c17_i32 = arith.constant 17 : i32
    %14 = tpu.dynamic_rotate %1 by %c17_i32 dim 1 : vector<8x256xf32>, i32 -> vector<8x256xf32>
    %c15_i32_4 = arith.constant 15 : i32
    %15 = tpu.dynamic_rotate %1 by %c15_i32_4 dim 1 : vector<8x256xf32>, i32 -> vector<8x256xf32>
    %16 = vector.shape_cast %6 : vector<1x256xi1> to vector<1x256xi1>
    %17 = vector.broadcast %16 : vector<1x256xi1> to vector<8x256xi1>
    %18 = arith.select %17, %15, %14 : vector<8x256xi1>, vector<8x256xf32>
    %19 = vector.shape_cast %8 : vector<1x256xi1> to vector<1x256xi1>
    %20 = vector.broadcast %19 : vector<1x256xi1> to vector<8x256xi1>
    %21 = arith.select %20, %14, %15 : vector<8x256xi1>, vector<8x256xf32>
    %22 = tpu.concatenate %18, %13, %21 in 0 : vector<8x256xf32>, vector<8x256xf32>, vector<8x256xf32> -> vector<24x256xf32>
    %23 = arith.truncf %22 : vector<24x256xf32> to vector<24x256xbf16>
    %c1_i32 = arith.constant 1 : i32
    %24 = tpu.dynamic_rotate %1 by %c1_i32 dim 1 : vector<8x256xf32>, i32 -> vector<8x256xf32>
    %c255_i32 = arith.constant 255 : i32
    %25 = tpu.dynamic_rotate %1 by %c255_i32 dim 1 : vector<8x256xf32>, i32 -> vector<8x256xf32>
    %26 = vector.shape_cast %6 : vector<1x256xi1> to vector<1x256xi1>
    %27 = vector.broadcast %26 : vector<1x256xi1> to vector<8x256xi1>
    %28 = arith.select %27, %25, %24 : vector<8x256xi1>, vector<8x256xf32>
    %29 = vector.shape_cast %8 : vector<1x256xi1> to vector<1x256xi1>
    %30 = vector.broadcast %29 : vector<1x256xi1> to vector<8x256xi1>
    %31 = arith.select %30, %24, %25 : vector<8x256xi1>, vector<8x256xf32>
    %32 = tpu.concatenate %28, %1, %31 in 0 : vector<8x256xf32>, vector<8x256xf32>, vector<8x256xf32> -> vector<24x256xf32>
    %33 = arith.truncf %32 : vector<24x256xf32> to vector<24x256xbf16>
    %c240_i32_5 = arith.constant 240 : i32
    %34 = tpu.dynamic_rotate %1 by %c240_i32_5 dim 1 : vector<8x256xf32>, i32 -> vector<8x256xf32>
    %c241_i32 = arith.constant 241 : i32
    %35 = tpu.dynamic_rotate %1 by %c241_i32 dim 1 : vector<8x256xf32>, i32 -> vector<8x256xf32>
    %c239_i32 = arith.constant 239 : i32
    %36 = tpu.dynamic_rotate %1 by %c239_i32 dim 1 : vector<8x256xf32>, i32 -> vector<8x256xf32>
    %37 = vector.shape_cast %6 : vector<1x256xi1> to vector<1x256xi1>
    %38 = vector.broadcast %37 : vector<1x256xi1> to vector<8x256xi1>
    %39 = arith.select %38, %36, %35 : vector<8x256xi1>, vector<8x256xf32>
    %40 = vector.shape_cast %8 : vector<1x256xi1> to vector<1x256xi1>
    %41 = vector.broadcast %40 : vector<1x256xi1> to vector<8x256xi1>
    %42 = arith.select %41, %35, %36 : vector<8x256xi1>, vector<8x256xf32>
    %43 = tpu.concatenate %39, %34, %42 in 0 : vector<8x256xf32>, vector<8x256xf32>, vector<8x256xf32> -> vector<24x256xf32>
    %44 = arith.truncf %43 : vector<24x256xf32> to vector<24x256xbf16>
    %45 = vector.shape_cast %10 : vector<1x256xi1> to vector<1x256xi1>
    %46 = vector.broadcast %45 : vector<1x256xi1> to vector<24x256xi1>
    %47 = arith.select %46, %44, %23 : vector<24x256xi1>, vector<24x256xbf16>
    %48 = vector.shape_cast %12 : vector<1x256xi1> to vector<1x256xi1>
    %49 = vector.broadcast %48 : vector<1x256xi1> to vector<24x256xi1>
    %50 = arith.select %49, %23, %44 : vector<24x256xi1>, vector<24x256xbf16>
    %c0_6 = arith.constant 0 : index
    %c0_7 = arith.constant 0 : index
    %c0_8 = arith.constant 0 : index
    %51 = vector.load %arg2[%c0_6, %c0_7, %c0_8] : memref<3x8x24xbf16, #tpu.memory_space<vmem>>, vector<1x8x24xbf16>
    %52 = vector.shape_cast %51 : vector<1x8x24xbf16> to vector<8x24xbf16>
    %cst = arith.constant dense<0.000000e+00> : vector<8x256xf32>
    %53 = tpu.matmul %52, %47, %cst {dimension_numbers = #tpu.dot_dimension_numbers<[1], [0], [0], [1], [0, 0, 1, 1], [], []>} : vector<8x24xbf16>, vector<24x256xbf16>, vector<8x256xf32> -> vector<8x256xf32>
    %c1 = arith.constant 1 : index
    %c0_9 = arith.constant 0 : index
    %c0_10 = arith.constant 0 : index
    %54 = vector.load %arg2[%c1, %c0_9, %c0_10] : memref<3x8x24xbf16, #tpu.memory_space<vmem>>, vector<1x8x24xbf16>
    %55 = vector.shape_cast %54 : vector<1x8x24xbf16> to vector<8x24xbf16>
    %cst_11 = arith.constant dense<0.000000e+00> : vector<8x256xf32>
    %56 = tpu.matmul %55, %33, %cst_11 {dimension_numbers = #tpu.dot_dimension_numbers<[1], [0], [0], [1], [0, 0, 1, 1], [], []>} : vector<8x24xbf16>, vector<24x256xbf16>, vector<8x256xf32> -> vector<8x256xf32>
    %57 = arith.addf %53, %56 : vector<8x256xf32>
    %c2 = arith.constant 2 : index
    %c0_12 = arith.constant 0 : index
    %c0_13 = arith.constant 0 : index
    %58 = vector.load %arg2[%c2, %c0_12, %c0_13] : memref<3x8x24xbf16, #tpu.memory_space<vmem>>, vector<1x8x24xbf16>
    %59 = vector.shape_cast %58 : vector<1x8x24xbf16> to vector<8x24xbf16>
    %cst_14 = arith.constant dense<0.000000e+00> : vector<8x256xf32>
    %60 = tpu.matmul %59, %50, %cst_14 {dimension_numbers = #tpu.dot_dimension_numbers<[1], [0], [0], [1], [0, 0, 1, 1], [], []>} : vector<8x24xbf16>, vector<24x256xbf16>, vector<8x256xf32> -> vector<8x256xf32>
    %61 = arith.addf %57, %60 : vector<8x256xf32>
    %cst_15 = arith.constant dense<0.000000e+00> : vector<8xf32>
    %62 = vector.multi_reduction <add>, %61, %cst_15 [1] : vector<8x256xf32> to vector<8xf32>
    %63 = vector.shape_cast %62 : vector<8xf32> to vector<8x1xf32>
    %cst_16 = arith.constant 2.560000e+02 : f32
    %64 = vector.broadcast %cst_16 : f32 to vector<8x1xf32>
    %65 = arith.divf %63, %64 : vector<8x1xf32>
    %66 = vector.broadcast %65 : vector<8x1xf32> to vector<8x256xf32>
    %67 = arith.subf %61, %66 : vector<8x256xf32>
    %68 = arith.mulf %67, %67 : vector<8x256xf32>
    %cst_17 = arith.constant dense<0.000000e+00> : vector<8xf32>
    %69 = vector.multi_reduction <add>, %68, %cst_17 [1] : vector<8x256xf32> to vector<8xf32>
    %70 = vector.shape_cast %69 : vector<8xf32> to vector<8x1xf32>
    %cst_18 = arith.constant 2.560000e+02 : f32
    %71 = vector.broadcast %cst_18 : f32 to vector<8x1xf32>
    %72 = arith.divf %70, %71 : vector<8x1xf32>
    %cst_19 = arith.constant 9.99999974E-6 : f32
    %73 = vector.broadcast %cst_19 : f32 to vector<8x1xf32>
    %74 = arith.addf %72, %73 : vector<8x1xf32>
    %75 = math.rsqrt %74 : vector<8x1xf32>
    %76 = vector.broadcast %75 : vector<8x1xf32> to vector<8x256xf32>
    %77 = arith.mulf %67, %76 : vector<8x256xf32>
    %cst_20 = arith.constant 0.000000e+00 : f32
    %78 = vector.broadcast %cst_20 : f32 to vector<8x256xf32>
    %79 = arith.maximumf %77, %78 : vector<8x256xf32>
    %c16_i32_21 = arith.constant 16 : i32
    %80 = tpu.dynamic_rotate %79 by %c16_i32_21 dim 1 : vector<8x256xf32>, i32 -> vector<8x256xf32>
    %c17_i32_22 = arith.constant 17 : i32
    %81 = tpu.dynamic_rotate %79 by %c17_i32_22 dim 1 : vector<8x256xf32>, i32 -> vector<8x256xf32>
    %c15_i32_23 = arith.constant 15 : i32
    %82 = tpu.dynamic_rotate %79 by %c15_i32_23 dim 1 : vector<8x256xf32>, i32 -> vector<8x256xf32>
    %83 = vector.shape_cast %6 : vector<1x256xi1> to vector<1x256xi1>
    %84 = vector.broadcast %83 : vector<1x256xi1> to vector<8x256xi1>
    %85 = arith.select %84, %82, %81 : vector<8x256xi1>, vector<8x256xf32>
    %86 = vector.shape_cast %8 : vector<1x256xi1> to vector<1x256xi1>
    %87 = vector.broadcast %86 : vector<1x256xi1> to vector<8x256xi1>
    %88 = arith.select %87, %81, %82 : vector<8x256xi1>, vector<8x256xf32>
    %89 = tpu.concatenate %85, %80, %88 in 0 : vector<8x256xf32>, vector<8x256xf32>, vector<8x256xf32> -> vector<24x256xf32>
    %90 = arith.truncf %89 : vector<24x256xf32> to vector<24x256xbf16>
    %c1_i32_24 = arith.constant 1 : i32
    %91 = tpu.dynamic_rotate %79 by %c1_i32_24 dim 1 : vector<8x256xf32>, i32 -> vector<8x256xf32>
    %c255_i32_25 = arith.constant 255 : i32
    %92 = tpu.dynamic_rotate %79 by %c255_i32_25 dim 1 : vector<8x256xf32>, i32 -> vector<8x256xf32>
    %93 = vector.shape_cast %6 : vector<1x256xi1> to vector<1x256xi1>
    %94 = vector.broadcast %93 : vector<1x256xi1> to vector<8x256xi1>
    %95 = arith.select %94, %92, %91 : vector<8x256xi1>, vector<8x256xf32>
    %96 = vector.shape_cast %8 : vector<1x256xi1> to vector<1x256xi1>
    %97 = vector.broadcast %96 : vector<1x256xi1> to vector<8x256xi1>
    %98 = arith.select %97, %91, %92 : vector<8x256xi1>, vector<8x256xf32>
    %99 = tpu.concatenate %95, %79, %98 in 0 : vector<8x256xf32>, vector<8x256xf32>, vector<8x256xf32> -> vector<24x256xf32>
    %100 = arith.truncf %99 : vector<24x256xf32> to vector<24x256xbf16>
    %c240_i32_26 = arith.constant 240 : i32
    %101 = tpu.dynamic_rotate %79 by %c240_i32_26 dim 1 : vector<8x256xf32>, i32 -> vector<8x256xf32>
    %c241_i32_27 = arith.constant 241 : i32
    %102 = tpu.dynamic_rotate %79 by %c241_i32_27 dim 1 : vector<8x256xf32>, i32 -> vector<8x256xf32>
    %c239_i32_28 = arith.constant 239 : i32
    %103 = tpu.dynamic_rotate %79 by %c239_i32_28 dim 1 : vector<8x256xf32>, i32 -> vector<8x256xf32>
    %104 = vector.shape_cast %6 : vector<1x256xi1> to vector<1x256xi1>
    %105 = vector.broadcast %104 : vector<1x256xi1> to vector<8x256xi1>
    %106 = arith.select %105, %103, %102 : vector<8x256xi1>, vector<8x256xf32>
    %107 = vector.shape_cast %8 : vector<1x256xi1> to vector<1x256xi1>
    %108 = vector.broadcast %107 : vector<1x256xi1> to vector<8x256xi1>
    %109 = arith.select %108, %102, %103 : vector<8x256xi1>, vector<8x256xf32>
    %110 = tpu.concatenate %106, %101, %109 in 0 : vector<8x256xf32>, vector<8x256xf32>, vector<8x256xf32> -> vector<24x256xf32>
    %111 = arith.truncf %110 : vector<24x256xf32> to vector<24x256xbf16>
    %112 = vector.shape_cast %10 : vector<1x256xi1> to vector<1x256xi1>
    %113 = vector.broadcast %112 : vector<1x256xi1> to vector<24x256xi1>
    %114 = arith.select %113, %111, %90 : vector<24x256xi1>, vector<24x256xbf16>
    %115 = vector.shape_cast %12 : vector<1x256xi1> to vector<1x256xi1>
    %116 = vector.broadcast %115 : vector<1x256xi1> to vector<24x256xi1>
    %117 = arith.select %116, %90, %111 : vector<24x256xi1>, vector<24x256xbf16>
    %c0_29 = arith.constant 0 : index
    %c0_30 = arith.constant 0 : index
    %c0_31 = arith.constant 0 : index
    %118 = vector.load %arg3[%c0_29, %c0_30, %c0_31] : memref<3x8x24xbf16, #tpu.memory_space<vmem>>, vector<1x8x24xbf16>
    %119 = vector.shape_cast %118 : vector<1x8x24xbf16> to vector<8x24xbf16>
    %cst_32 = arith.constant dense<0.000000e+00> : vector<8x256xf32>
    %120 = tpu.matmul %119, %114, %cst_32 {dimension_numbers = #tpu.dot_dimension_numbers<[1], [0], [0], [1], [0, 0, 1, 1], [], []>} : vector<8x24xbf16>, vector<24x256xbf16>, vector<8x256xf32> -> vector<8x256xf32>
    %c1_33 = arith.constant 1 : index
    %c0_34 = arith.constant 0 : index
    %c0_35 = arith.constant 0 : index
    %121 = vector.load %arg3[%c1_33, %c0_34, %c0_35] : memref<3x8x24xbf16, #tpu.memory_space<vmem>>, vector<1x8x24xbf16>
    %122 = vector.shape_cast %121 : vector<1x8x24xbf16> to vector<8x24xbf16>
    %cst_36 = arith.constant dense<0.000000e+00> : vector<8x256xf32>
    %123 = tpu.matmul %122, %100, %cst_36 {dimension_numbers = #tpu.dot_dimension_numbers<[1], [0], [0], [1], [0, 0, 1, 1], [], []>} : vector<8x24xbf16>, vector<24x256xbf16>, vector<8x256xf32> -> vector<8x256xf32>
    %124 = arith.addf %120, %123 : vector<8x256xf32>
    %c2_37 = arith.constant 2 : index
    %c0_38 = arith.constant 0 : index
    %c0_39 = arith.constant 0 : index
    %125 = vector.load %arg3[%c2_37, %c0_38, %c0_39] : memref<3x8x24xbf16, #tpu.memory_space<vmem>>, vector<1x8x24xbf16>
    %126 = vector.shape_cast %125 : vector<1x8x24xbf16> to vector<8x24xbf16>
    %cst_40 = arith.constant dense<0.000000e+00> : vector<8x256xf32>
    %127 = tpu.matmul %126, %117, %cst_40 {dimension_numbers = #tpu.dot_dimension_numbers<[1], [0], [0], [1], [0, 0, 1, 1], [], []>} : vector<8x24xbf16>, vector<24x256xbf16>, vector<8x256xf32> -> vector<8x256xf32>
    %128 = arith.addf %124, %127 : vector<8x256xf32>
    %cst_41 = arith.constant dense<0.000000e+00> : vector<8xf32>
    %129 = vector.multi_reduction <add>, %128, %cst_41 [1] : vector<8x256xf32> to vector<8xf32>
    %130 = vector.shape_cast %129 : vector<8xf32> to vector<8x1xf32>
    %cst_42 = arith.constant 2.560000e+02 : f32
    %131 = vector.broadcast %cst_42 : f32 to vector<8x1xf32>
    %132 = arith.divf %130, %131 : vector<8x1xf32>
    %133 = vector.broadcast %132 : vector<8x1xf32> to vector<8x256xf32>
    %134 = arith.subf %128, %133 : vector<8x256xf32>
    %135 = arith.mulf %134, %134 : vector<8x256xf32>
    %cst_43 = arith.constant dense<0.000000e+00> : vector<8xf32>
    %136 = vector.multi_reduction <add>, %135, %cst_43 [1] : vector<8x256xf32> to vector<8xf32>
    %137 = vector.shape_cast %136 : vector<8xf32> to vector<8x1xf32>
    %cst_44 = arith.constant 2.560000e+02 : f32
    %138 = vector.broadcast %cst_44 : f32 to vector<8x1xf32>
    %139 = arith.divf %137, %138 : vector<8x1xf32>
    %cst_45 = arith.constant 9.99999974E-6 : f32
    %140 = vector.broadcast %cst_45 : f32 to vector<8x1xf32>
    %141 = arith.addf %139, %140 : vector<8x1xf32>
    %142 = math.rsqrt %141 : vector<8x1xf32>
    %143 = vector.broadcast %142 : vector<8x1xf32> to vector<8x256xf32>
    %144 = arith.mulf %134, %143 : vector<8x256xf32>
    %145 = arith.addf %144, %1 : vector<8x256xf32>
    %c0_46 = arith.constant 0 : index
    %c0_47 = arith.constant 0 : index
    %c0_48 = arith.constant 0 : index
    %146 = vector.load %arg4[%c0_46, %c0_47, %c0_48] : memref<1x8x256xf32, #tpu.memory_space<vmem>>, vector<1x8x256xf32>
    %147 = vector.shape_cast %146 : vector<1x8x256xf32> to vector<8x256xf32>
    %148 = vector.shape_cast %145 : vector<8x256xf32> to vector<1x8x256xf32>
    tpu.vector_store %arg4[%c0_46, %c0_47, %c0_48], %148 {strides = array<i32>} : memref<1x8x256xf32, #tpu.memory_space<vmem>>, vector<1x8x256xf32>,
    return
  }
  func.func @transform_0(%arg0: i32) -> (i32, i32, i32) {
    %c0_i32 = arith.constant 0 : i32
    %c0_i32_0 = arith.constant 0 : i32
    %c0_i32_1 = arith.constant 0 : i32
    return %arg0, %c0_i32, %c0_i32_0 : i32, i32, i32
  }
  func.func @transform_1(%arg0: i32) -> (i32, i32, i32) {
    %c0_i32 = arith.constant 0 : i32
    %c0_i32_0 = arith.constant 0 : i32
    %c0_i32_1 = arith.constant 0 : i32
    %c0_i32_2 = arith.constant 0 : i32
    return %c0_i32, %c0_i32_0, %c0_i32_1 : i32, i32, i32
  }
  func.func @transform_2(%arg0: i32) -> (i32, i32, i32) {
    %c0_i32 = arith.constant 0 : i32
    %c0_i32_0 = arith.constant 0 : i32
    %c0_i32_1 = arith.constant 0 : i32
    %c0_i32_2 = arith.constant 0 : i32
    return %c0_i32, %c0_i32_0, %c0_i32_1 : i32, i32, i32
  }
  func.func @transform_3(%arg0: i32) -> (i32, i32, i32) {
    %c0_i32 = arith.constant 0 : i32
    %c0_i32_0 = arith.constant 0 : i32
    %c0_i32_1 = arith.constant 0 : i32
    return %arg0, %c0_i32, %c0_i32_0 : i32, i32, i32
  }
}

</mosaic_0001>

<llo_original>
// kernel: resblock_pallas.1
$region0: #{resblock_pallas.1}
  #allocation0 [shape = 'u32[]', space=smem, size = 0x4, offset = 0x4, fixed_abs, tag = 'smem constant byte address 0x4 - core index']
  #allocation1 [shape = 'u32[144,128]{1,0:T(1,128)}', space=vmem, size = 0x12000, scoped, tag = 'internal scratch']
  %s0 = inlined_call_operand.vmem [shape: f32[2,8,256], index: 0, kind: input, shape index: {}]
  %s1 = inlined_call_operand.vmem [shape: bf16[3,8,24], index: 1, kind: input, shape index: {}]
  %s2 = inlined_call_operand.vmem [shape: bf16[3,8,24], index: 2, kind: input, shape index: {}]
  %s3 = inlined_call_operand.vmem [shape: f32[2,8,256], index: 3, kind: output, shape index: {}]
  %s4 = sld [smem:[#allocation0]]
  $region45: #{resblock_pallas.1} parent=0
    _
  %s6 = ssub.s32 1, %s4
  %s7 = scalar_select 0, %s6, %s4
  loop: start=0, step=1, limit=4
  $region2: #{resblock_pallas.1} parent=0 // loop_pre_header
    _
  $region3: #{resblock_pallas.1} parent=0 // loop_header
    %s9 = sphi 0, %s13
    %p10 = scmp.ge.s32.totalorder %s9, 4
    %s19 = sphi 0, %s21
    %s22 = sphi 0, %s19
    %s23 = sphi 0, %s22
    %s39 = sphi 0, %s23
    %s43 = sphi 0, %s43
    %s45 = sphi 0, %s43
    %s46 = sphi 0, %s45
    %s60 = sphi 0, %s46
    %s64 = sphi 0, %s64
    %s66 = sphi 0, %s64
    %s67 = sphi 0, %s66
    %s81 = sphi 0, %s67
    %s87 = sphi 0, %s89
    %s90 = sphi 0, %s87
    %s91 = sphi 0, %s90
    %s107 = sphi 0, %s91
  $region4: #{resblock_pallas.1} parent=0 // loop_header_branch
    %12 = sbr.rel (%p10) target = $region8
  $region5: #{resblock_pallas.1} parent=0 // loop_body
    %s14 = ssub.s32 %s9, 1
    %s15 = ssub.s32 %s9, 2
    %s16 = sadd.s32 %s9, 1
    %s17 = ssub.s32 %s9, %s16
    %p18 = scmp.eq.s32.totalorder %s17, 0
    %s20 = sadd.s32 %s19, 1
    %s21 = scalar_select %p18, %s19, %s20
    %p24 = pneg %p18
    %p25 = scmp.eq.s32.totalorder %s9, 1
    %p26 = por %p24, %p25
    %p27 = scmp.ne.s32.totalorder %s19, %s22
    %p28 = scmp.eq.s32.totalorder %s9, 0
    %p29 = por %p27, %p28
    %p30 = scmp.ne.s32.totalorder %s19, %s22
    %p31 = scmp.eq.s32.totalorder %s14, 1
    %p32 = por %p30, %p31
    %p33 = scmp.ne.s32.totalorder %s22, %s23
    %p34 = scmp.eq.s32.totalorder %s14, 0
    %p35 = por %p33, %p34
    %p36 = scmp.ne.s32.totalorder %s22, %s23
    %p37 = scmp.eq.s32.totalorder %s15, 1
    %p38 = por %p36, %p37
    %p40 = scmp.ne.s32.totalorder %s23, %s39
    %p41 = scmp.eq.s32.totalorder %s15, 0
    %p42 = por %p40, %p41
    %s44 = sadd.s32 %s43, 1
    %p47 = scmp.eq.s32.totalorder %s9, 1
    %p48 = scmp.ne.s32.totalorder %s43, %s45
    %p49 = scmp.eq.s32.totalorder %s9, 0
    %p50 = por %p48, %p49
    %p51 = scmp.ne.s32.totalorder %s43, %s45
    %p52 = scmp.eq.s32.totalorder %s14, 1
    %p53 = por %p51, %p52
    %p54 = scmp.ne.s32.totalorder %s45, %s46
    %p55 = scmp.eq.s32.totalorder %s14, 0
    %p56 = por %p54, %p55
    %p57 = scmp.ne.s32.totalorder %s45, %s46
    %p58 = scmp.eq.s32.totalorder %s15, 1
    %p59 = por %p57, %p58
    %p61 = scmp.ne.s32.totalorder %s46, %s60
    %p62 = scmp.eq.s32.totalorder %s15, 0
    %p63 = por %p61, %p62
    %s65 = sadd.s32 %s64, 1
    %p68 = scmp.eq.s32.totalorder %s9, 1
    %p69 = scmp.ne.s32.totalorder %s64, %s66
    %p70 = scmp.eq.s32.totalorder %s9, 0
    %p71 = por %p69, %p70
    %p72 = scmp.ne.s32.totalorder %s64, %s66
    %p73 = scmp.eq.s32.totalorder %s14, 1
    %p74 = por %p72, %p73
    %p75 = scmp.ne.s32.totalorder %s66, %s67
    %p76 = scmp.eq.s32.totalorder %s14, 0
    %p77 = por %p75, %p76
    %p78 = scmp.ne.s32.totalorder %s66, %s67
    %p79 = scmp.eq.s32.totalorder %s15, 1
    %p80 = por %p78, %p79
    %p82 = scmp.ne.s32.totalorder %s67, %s81
    %p83 = scmp.eq.s32.totalorder %s15, 0
    %p84 = por %p82, %p83
    %s85 = ssub.s32 %s9, %s16
    %p86 = scmp.eq.s32.totalorder %s85, 0
    %s88 = sadd.s32 %s87, 1
    %s89 = scalar_select %p86, %s87, %s88
    %p92 = pneg %p86
    %p93 = scmp.eq.s32.totalorder %s9, 1
    %p94 = por %p92, %p93
    %p95 = scmp.ne.s32.totalorder %s87, %s90
    %p96 = scmp.eq.s32.totalorder %s9, 0
    %p97 = por %p95, %p96
    %p98 = scmp.ne.s32.totalorder %s87, %s90
    %p99 = scmp.eq.s32.totalorder %s14, 1
    %p100 = por %p98, %p99
    %p101 = scmp.ne.s32.totalorder %s90, %s91
    %p102 = scmp.eq.s32.totalorder %s14, 0
    %p103 = por %p101, %p102
    %p104 = scmp.ne.s32.totalorder %s90, %s91
    %p105 = scmp.eq.s32.totalorder %s15, 1
    %p106 = por %p104, %p105
    %p108 = scmp.ne.s32.totalorder %s91, %s107
    %p109 = scmp.eq.s32.totalorder %s15, 0
    %p110 = por %p108, %p109
    %p111 = scmp.le.s32.totalorder 1, %s9
    %p112 = scmp.lt.s32.totalorder %s9, 3
    %p113 = pnand %p111, %p112
    %p114 = pneg %p113
    // Predicated region
    $region9: #{resblock_pallas.1} parent=5 // pred_check
      _
    $region10: #{resblock_pallas.1} parent=5 // pred_check_branch
      %116 = sbr.rel (%p113) target = $region12
    $region11: #{resblock_pallas.1} parent=5 // pred_region
      %s117 = ssub.s32 %s9, 1
      // Predicated region
      $region13: #{resblock_pallas.1} parent=11 // pred_check
        %p118 = pneg %p56
      $region14: #{resblock_pallas.1} parent=11 // pred_check_branch
        %120 = sbr.rel (%p118) target = $region16
      $region15: #{resblock_pallas.1} parent=11 // pred_region
        _
      $region16: #{resblock_pallas.1} parent=11 // pred_fallthru
        _
      // Predicated region
      $region17: #{resblock_pallas.1} parent=11 // pred_check
        %p121 = pneg %p77
      $region18: #{resblock_pallas.1} parent=11 // pred_check_branch
        %123 = sbr.rel (%p121) target = $region20
      $region19: #{resblock_pallas.1} parent=11 // pred_region
        _
      $region20: #{resblock_pallas.1} parent=11 // pred_fallthru
        _
    $region12: #{resblock_pallas.1} parent=5 // pred_fallthru
      _
    %p124 = scmp.lt.s32.totalorder %s9, 2
    // Predicated region
    $region21: #{resblock_pallas.1} parent=5 // pred_check
      %p125 = pneg %p124
    $region22: #{resblock_pallas.1} parent=5 // pred_check_branch
      %127 = sbr.rel (%p125) target = $region24
    $region23: #{resblock_pallas.1} parent=5 // pred_region
      // Predicated region
      $region25: #{resblock_pallas.1} parent=23 // pred_check
        %p128 = pneg %p29
      $region26: #{resblock_pallas.1} parent=23 // pred_check_branch
        %130 = sbr.rel (%p128) target = $region28
      $region27: #{resblock_pallas.1} parent=23 // pred_region
        %p131 = scmp.lt.s32.totalorder %s9, 1
        %s132 = scalar_select %p131, %s9, 1
        %s133 = smul.addr %s132, 2
        %s134 = smul.addr %s133, 8
        %s135 = scalar_lea.vmem %s0, %s134
      $region28: #{resblock_pallas.1} parent=23 // pred_fallthru
        _
    $region24: #{resblock_pallas.1} parent=5 // pred_fallthru
      _
    %p136 = scmp.le.s32.totalorder 1, %s9
    %p137 = scmp.lt.s32.totalorder %s9, 3
    %p138 = pnand %p136, %p137
    %p139 = pneg %p138
    // Predicated region
    $region29: #{resblock_pallas.1} parent=5 // pred_check
      _
    $region30: #{resblock_pallas.1} parent=5 // pred_check_branch
      %141 = sbr.rel (%p138) target = $region32
    $region31: #{resblock_pallas.1} parent=5 // pred_region
      %s142 = ssub.s32 %s9, 1
      %p143 = scmp.lt.s32.totalorder %s14, 1
      %s144 = scalar_select %p143, %s14, 1
      %s145 = smul.addr %s144, 2
      %s146 = smul.addr %s145, 8
      %s147 = scalar_lea.vmem %s0, %s146
      %p148 = pneg %p35
      %p149 = pneg %p32
      %p150 = pneg %p56
      %p151 = pneg %p53
      %p152 = pneg %p77
      %p153 = pneg %p74
      %p154 = pneg %p103
      %p155 = pneg %p100
      %p156 = scmp.lt.s32.totalorder %s14, 1
      %s157 = scalar_select %p156, %s14, 1
      %s158 = smul.addr %s157, 2
      %s159 = smul.addr %s158, 8
      %s160 = scalar_lea.vmem %s3, %s159
      %p161 = scmp.lt.s32.totalorder %s14, 1
      %s162 = scalar_select %p161, %s14, 1
      %s163 = smul.addr %s162, 2
      %s164 = smul.addr %s163, 8
      %s165 = scalar_lea.vmem %s0, %s164
      %p166 = scmp.lt.s32.totalorder %s14, 1
      %s167 = scalar_select %p166, %s14, 1
      %s168 = smul.addr %s167, 2
      %s169 = smul.addr %s168, 8
      %s170 = scalar_lea.vmem %s3, %s169
      %v174 = vld [vmem:[%s165] sm:$0xff]
      %v175 = vld [vmem:[%s165 + $0x8] sm:$0xff]
      %v176 = vlaneseq
      %v177 = vand.u32 %v176, 127
      %v178 = vadd.s32 %v177, 128
      %v179 = vand.u32 %v177, 15
      %v180 = vand.u32 %v178, 15
      %vm181 = vcmp.eq.s32.totalorder %v179, 0
      %vm182 = vcmp.eq.s32.totalorder %v180, 0
      %vm183 = vcmp.eq.s32.totalorder %v179, 15
      %vm184 = vcmp.eq.s32.totalorder %v180, 15
      %vm185 = vcmp.lt.s32.totalorder %v177, 16
      %vm186 = vcmp.lt.s32.totalorder %v178, 16
      %vm187 = vcmp.ge.s32.totalorder %v177, 240
      %vm188 = vcmp.ge.s32.totalorder %v178, 240
      %189 = vrot.lane.b32.xlu0 %v174, 16
      %v190 = vpop.permute.xlu0 %189
      %191 = vrot.lane.b32.xlu0 %v175, 16
      %v192 = vpop.permute.xlu0 %191
      %v193 = vsel %vm185, %v190, %v192
      %v194 = vsel %vm185, %v192, %v190
      %195 = vrot.lane.b32.xlu0 %v174, 17
      %v196 = vpop.permute.xlu0 %195
      %197 = vrot.lane.b32.xlu0 %v175, 17
      %v198 = vpop.permute.xlu0 %197
      %vm199 = vcmp.lt.s32.totalorder %v177, 17
      %v200 = vsel %vm199, %v196, %v198
      %v201 = vsel %vm199, %v198, %v196
      %202 = vrot.lane.b32.xlu0 %v174, 15
      %v203 = vpop.permute.xlu0 %202
      %204 = vrot.lane.b32.xlu0 %v175, 15
      %v205 = vpop.permute.xlu0 %204
      %vm206 = vcmp.lt.s32.totalorder %v177, 15
      %v207 = vsel %vm206, %v203, %v205
      %v208 = vsel %vm206, %v205, %v203
      %v209 = vsel %vm181, 1, 0
      %v210 = vsel %vm182, 1, 0
      %vm211 = vcmp.eq.s32.totalorder %v209, 1
      %vm212 = vcmp.eq.s32.totalorder %v210, 1
      %v213 = vsel %vm211, %v208, %v201
      %v214 = vsel %vm212, %v207, %v200
      %v215 = vsel %vm183, 1, 0
      %v216 = vsel %vm184, 1, 0
      %vm217 = vcmp.eq.s32.totalorder %v215, 1
      %vm218 = vcmp.eq.s32.totalorder %v216, 1
      %v219 = vsel %vm217, %v201, %v208
      %v220 = vsel %vm218, %v200, %v207
      %v221 = vpack.c.bf16 %v194, %v213
      %v222 = vpack.c.bf16 %v193, %v214
      %v223 = vpack.c.bf16 %v219, %v219
      %v224 = vpack.c.bf16 %v220, %v220
      %225 = vrot.lane.b32.xlu0 %v174, 1
      %v226 = vpop.permute.xlu0 %225
      %227 = vrot.lane.b32.xlu0 %v175, 1
      %v228 = vpop.permute.xlu0 %227
      %vm229 = vcmp.lt.s32.totalorder %v177, 1
      %v230 = vsel %vm229, %v226, %v228
      %v231 = vsel %vm229, %v228, %v226
      %232 = vrot.lane.b32.xlu0 %v174, 127
      %v233 = vpop.permute.xlu0 %232
      %234 = vrot.lane.b32.xlu0 %v175, 127
      %v235 = vpop.permute.xlu0 %234
      %vm236 = vcmp.lt.s32.totalorder %v177, 127
      %v237 = vsel %vm236, %v233, %v235
      %v238 = vsel %vm236, %v235, %v233
      %v239 = vsel %vm211, %v237, %v231
      %v240 = vsel %vm212, %v238, %v230
      %v241 = vsel %vm217, %v231, %v237
      %v242 = vsel %vm218, %v230, %v238
      %v243 = vpack.c.bf16 %v174, %v239
      %v244 = vpack.c.bf16 %v175, %v240
      %v245 = vpack.c.bf16 %v241, %v241
      %v246 = vpack.c.bf16 %v242, %v242
      %247 = vrot.lane.b32.xlu0 %v174, 112
      %v248 = vpop.permute.xlu0 %247
      %249 = vrot.lane.b32.xlu0 %v175, 112
      %v250 = vpop.permute.xlu0 %249
      %vm251 = vcmp.lt.s32.totalorder %v177, 112
      %v252 = vsel %vm251, %v248, %v250
      %v253 = vsel %vm251, %v250, %v248
      %254 = vrot.lane.b32.xlu0 %v174, 113
      %v255 = vpop.permute.xlu0 %254
      %256 = vrot.lane.b32.xlu0 %v175, 113
      %v257 = vpop.permute.xlu0 %256
      %vm258 = vcmp.lt.s32.totalorder %v177, 113
      %v259 = vsel %vm258, %v255, %v257
      %v260 = vsel %vm258, %v257, %v255
      %261 = vrot.lane.b32.xlu0 %v174, 111
      %v262 = vpop.permute.xlu0 %261
      %263 = vrot.lane.b32.xlu0 %v175, 111
      %v264 = vpop.permute.xlu0 %263
      %vm265 = vcmp.lt.s32.totalorder %v177, 111
      %v266 = vsel %vm265, %v262, %v264
      %v267 = vsel %vm265, %v264, %v262
      %v268 = vsel %vm211, %v266, %v259
      %v269 = vsel %vm212, %v267, %v260
      %v270 = vsel %vm217, %v259, %v266
      %v271 = vsel %vm218, %v260, %v267
      %v272 = vpack.c.bf16 %v252, %v268
      %v273 = vpack.c.bf16 %v253, %v269
      %v274 = vpack.c.bf16 %v270, %v270
      %v275 = vpack.c.bf16 %v271, %v271
      %v276 = vsel %vm185, 1, 0
      %v277 = vsel %vm186, 1, 0
      %vm278 = vcmp.eq.s32.totalorder %v276, 1
      %vm279 = vcmp.eq.s32.totalorder %v277, 1
      %vm280 = vmpackc.low %vm279, %vm278
      %v281 = vsel %vm280, 65537, 0
      %v282 = vlaneseq
      %v283 = vshrl.u32 %v282, 7
      %v284 = vsub.s32 0, %v283
      %v285 = vrot.slane %v281, %v284
      %v286 = vlaneseq
      %v287 = vshrl.u32 %v286, 7
      %v288 = vsub.s32 4, %v287
      %v289 = vrot.slane %v281, %v288
      %vm290 = vcmp.ne.s16.totalorder %v285, 0
      %vm291 = vcmp.ne.s16.totalorder %v289, 0
      %v292 = vsel %vm290, %v272, %v221
      %v293 = vsel %vm291, %v273, %v222
      %v294 = vsel %vm290, %v274, %v223
      %v295 = vsel %vm291, %v275, %v224
      %v296 = vsel %vm187, 1, 0
      %v297 = vsel %vm188, 1, 0
      %vm298 = vcmp.eq.s32.totalorder %v296, 1
      %vm299 = vcmp.eq.s32.totalorder %v297, 1
      %vm300 = vmpackc.low %vm299, %vm298
      %v301 = vsel %vm300, 65537, 0
      %v302 = vlaneseq
      %v303 = vshrl.u32 %v302, 7
      %v304 = vsub.s32 0, %v303
      %v305 = vrot.slane %v301, %v304
      %v306 = vlaneseq
      %v307 = vshrl.u32 %v306, 7
      %v308 = vsub.s32 4, %v307
      %v309 = vrot.slane %v301, %v308
      %vm310 = vcmp.ne.s16.totalorder %v305, 0
      %vm311 = vcmp.ne.s16.totalorder %v309, 0
      %v312 = vsel %vm310, %v221, %v272
      %v313 = vsel %vm311, %v222, %v273
      %v314 = vsel %vm310, %v223, %v274
      %v315 = vsel %vm311, %v224, %v275
      %v316 = vld [vmem:[%s1] sm:$0xf]
      %s317 = scalar_lea.vmem %s1, 4
      %v318 = vld [vmem:[%s317] sm:$0xf]
      %vm319 = vcmask 195584
      %v321 = vsel %vm319, %v318, 0
      %vm323 = vcmask 1043456
      %v325 = vsel %vm323, %v245, 0
      %v328 = vsel %vm323, %v246, 0
      %330 = vmatprep.subr.bf16.mxu0 0
      %331 = vmatpush1.bf16.msra.mxu0 0
      %332 = vmatprep.subr.bf16.mxu0 0
      %333 = vmatpush1.bf16.msra.mxu0 0
      %334 = vmatprep.subr.bf16.mxu0 0
      %335 = vmatpush1.bf16.msra.mxu0 0
      %336 = vmatprep.subr.bf16.mxu0 0
      %337 = vmatpush1.bf16.msra.mxu0 0
      %338 = vmatprep.subr.bf16.mxu0 0
      %339 = vmatpush1.bf16.msra.mxu0 0
      %340 = vmatprep.subr.bf16.mxu0 0
      %341 = vmatpush1.bf16.msra.mxu0 0
      %342 = vmatprep.subr.bf16.mxu0 %v328
      %343 = vmatpush1.bf16.msra.mxu0 %v325
      %344 = vmatprep.subr.bf16.mxu0 %v244
      %345 = vmatpush1.bf16.msra.mxu0 %v243
      %346 = vmatprep.subr.bf16.mxu0 0
      %347 = vmatpush2.bf16.msra.mxu0 0
      %348 = vmatprep.subr.bf16.mxu0 0
      %349 = vmatpush2.bf16.msra.mxu0 0
      %350 = vmatprep.subr.bf16.mxu0 0
      %351 = vmatpush2.bf16.msra.mxu0 0
      %352 = vmatprep.subr.bf16.mxu0 0
      %353 = vmatpush2.bf16.msra.mxu0 0
      %354 = vmatprep.subr.bf16.mxu0 0
      %355 = vmatpush2.bf16.msra.mxu0 0
      %356 = vmatprep.subr.bf16.mxu0 0
      %357 = vmatpush2.bf16.msra.mxu0 0
      %358 = vmatprep.subr.bf16.mxu0 0
      %359 = vmatpush2.bf16.msra.mxu0 0
      %360 = vmatprep.subr.bf16.mxu0 0
      %361 = vmatpush2.bf16.msra.mxu0 0
      %362 = vmatprep.mubr.bf16.mxu0 0
      %363 = vmatmul.mubr.bf16.gmra.mxu0 %v321
      %v364 = vpop.f32.mrf.mxu0
      %v365 = vadd.f32 0.0, %v364
      %v366 = vpop.f32.mrf.mxu0
      %v367 = vadd.f32 0.0, %v366
      %v368 = vpop.f32.mrf.mxu0
      %v369 = vpop.f32.mrf.mxu0
      %370 = vdwg.mxu0
      %v372 = vsel %vm319, %v316, 0
      %v375 = vsel %vm323, %v294, 0
      %v378 = vsel %vm323, %v295, 0
      %380 = vmatprep.subr.bf16.mxu0 0
      %381 = vmatpush1.bf16.msra.mxu0 0
      %382 = vmatprep.subr.bf16.mxu0 0
      %383 = vmatpush1.bf16.msra.mxu0 0
      %384 = vmatprep.subr.bf16.mxu0 0
      %385 = vmatpush1.bf16.msra.mxu0 0
      %386 = vmatprep.subr.bf16.mxu0 0
      %387 = vmatpush1.bf16.msra.mxu0 0
      %388 = vmatprep.subr.bf16.mxu0 0
      %389 = vmatpush1.bf16.msra.mxu0 0
      %390 = vmatprep.subr.bf16.mxu0 0
      %391 = vmatpush1.bf16.msra.mxu0 0
      %392 = vmatprep.subr.bf16.mxu0 %v378
      %393 = vmatpush1.bf16.msra.mxu0 %v375
      %394 = vmatprep.subr.bf16.mxu0 %v293
      %395 = vmatpush1.bf16.msra.mxu0 %v292
      %396 = vmatprep.subr.bf16.mxu0 0
      %397 = vmatpush2.bf16.msra.mxu0 0
      %398 = vmatprep.subr.bf16.mxu0 0
      %399 = vmatpush2.bf16.msra.mxu0 0
      %400 = vmatprep.subr.bf16.mxu0 0
      %401 = vmatpush2.bf16.msra.mxu0 0
      %402 = vmatprep.subr.bf16.mxu0 0
      %403 = vmatpush2.bf16.msra.mxu0 0
      %404 = vmatprep.subr.bf16.mxu0 0
      %405 = vmatpush2.bf16.msra.mxu0 0
      %406 = vmatprep.subr.bf16.mxu0 0
      %407 = vmatpush2.bf16.msra.mxu0 0
      %408 = vmatprep.subr.bf16.mxu0 0
      %409 = vmatpush2.bf16.msra.mxu0 0
      %410 = vmatprep.subr.bf16.mxu0 0
      %411 = vmatpush2.bf16.msra.mxu0 0
      %412 = vmatprep.mubr.bf16.mxu0 0
      %413 = vmatmul.mubr.bf16.gmra.mxu0 %v372
      %v414 = vpop.f32.mrf.mxu0
      %v415 = vadd.f32 %v365, %v414
      %v416 = vpop.f32.mrf.mxu0
      %v417 = vadd.f32 %v367, %v416
      %v418 = vpop.f32.mrf.mxu0
      %v419 = vpop.f32.mrf.mxu0
      %420 = vdwg.mxu0
      %s421 = scalar_lea.vmem %s1, 8
      %v422 = vld [vmem:[%s421] sm:$0xf]
      %v424 = vsel %vm319, %v422, 0
      %v427 = vsel %vm323, %v314, 0
      %v430 = vsel %vm323, %v315, 0
      %432 = vmatprep.subr.bf16.mxu0 0
      %433 = vmatpush1.bf16.msra.mxu0 0
      %434 = vmatprep.subr.bf16.mxu0 0
      %435 = vmatpush1.bf16.msra.mxu0 0
      %436 = vmatprep.subr.bf16.mxu0 0
      %437 = vmatpush1.bf16.msra.mxu0 0
      %438 = vmatprep.subr.bf16.mxu0 0
      %439 = vmatpush1.bf16.msra.mxu0 0
      %440 = vmatprep.subr.bf16.mxu0 0
      %441 = vmatpush1.bf16.msra.mxu0 0
      %442 = vmatprep.subr.bf16.mxu0 0
      %443 = vmatpush1.bf16.msra.mxu0 0
      %444 = vmatprep.subr.bf16.mxu0 %v430
      %445 = vmatpush1.bf16.msra.mxu0 %v427
      %446 = vmatprep.subr.bf16.mxu0 %v313
      %447 = vmatpush1.bf16.msra.mxu0 %v312
      %448 = vmatprep.subr.bf16.mxu0 0
      %449 = vmatpush2.bf16.msra.mxu0 0
      %450 = vmatprep.subr.bf16.mxu0 0
      %451 = vmatpush2.bf16.msra.mxu0 0
      %452 = vmatprep.subr.bf16.mxu0 0
      %453 = vmatpush2.bf16.msra.mxu0 0
      %454 = vmatprep.subr.bf16.mxu0 0
      %455 = vmatpush2.bf16.msra.mxu0 0
      %456 = vmatprep.subr.bf16.mxu0 0
      %457 = vmatpush2.bf16.msra.mxu0 0
      %458 = vmatprep.subr.bf16.mxu0 0
      %459 = vmatpush2.bf16.msra.mxu0 0
      %460 = vmatprep.subr.bf16.mxu0 0
      %461 = vmatpush2.bf16.msra.mxu0 0
      %462 = vmatprep.subr.bf16.mxu0 0
      %463 = vmatpush2.bf16.msra.mxu0 0
      %464 = vmatprep.mubr.bf16.mxu0 0
      %465 = vmatmul.mubr.bf16.gmra.mxu0 %v424
      %v466 = vpop.f32.mrf.mxu0
      %v467 = vadd.f32 0.0, %v466
      %v468 = vpop.f32.mrf.mxu0
      %v469 = vadd.f32 0.0, %v468
      %v470 = vpop.f32.mrf.mxu0
      %v471 = vpop.f32.mrf.mxu0
      %472 = vdwg.mxu0
      %v473 = vadd.f32 %v415, %v467
      %v474 = vadd.f32 %v417, %v469
      %v475 = vadd.f32 %v473, %v474
      %476 = vadd.xlane.f32.xlu0 %v475
      %v477 = vpop.xlane.xlu0 %476
      %v478 = vrcp.pop 256.0
      %v479 = vmul.f32 %v477, %v478
      %v480 = vsub.f32 %v473, %v479
      %v481 = vsub.f32 %v474, %v479
      %v482 = vmul.f32 %v480, %v480
      %v483 = vmul.f32 %v481, %v481
      %v484 = vadd.f32 %v482, %v483
      %485 = vadd.xlane.f32.xlu0 %v484
      %v486 = vpop.xlane.xlu0 %485
      %v487 = vmul.f32 %v486, %v478
      %v488 = vadd.f32 %v487, 1e-05
      %v489 = vrsqrt.pop %v488
      %v490 = vmul.f32 %v480, %v489
      %v491 = vmul.f32 %v481, %v489
      %v492 = vmax.f32 %v490, 0.0
      %v493 = vmax.f32 %v491, 0.0
      %494 = vrot.lane.b32.xlu0 %v492, 16
      %v495 = vpop.permute.xlu0 %494
      %496 = vrot.lane.b32.xlu0 %v493, 16
      %v497 = vpop.permute.xlu0 %496
      %v498 = vsel %vm185, %v495, %v497
      %v499 = vsel %vm185, %v497, %v495
      %500 = vrot.lane.b32.xlu0 %v492, 17
      %v501 = vpop.permute.xlu0 %500
      %502 = vrot.lane.b32.xlu0 %v493, 17
      %v503 = vpop.permute.xlu0 %502
      %v504 = vsel %vm199, %v501, %v503
      %v505 = vsel %vm199, %v503, %v501
      %506 = vrot.lane.b32.xlu0 %v492, 15
      %v507 = vpop.permute.xlu0 %506
      %508 = vrot.lane.b32.xlu0 %v493, 15
      %v509 = vpop.permute.xlu0 %508
      %v510 = vsel %vm206, %v507, %v509
      %v511 = vsel %vm206, %v509, %v507
      %v512 = vsel %vm211, %v511, %v505
      %v513 = vsel %vm212, %v510, %v504
      %v514 = vsel %vm217, %v505, %v511
      %v515 = vsel %vm218, %v504, %v510
      %v516 = vpack.c.bf16 %v499, %v512
      %v517 = vpack.c.bf16 %v498, %v513
      %v518 = vpack.c.bf16 %v514, %v514
      %v519 = vpack.c.bf16 %v515, %v515
      %520 = vrot.lane.b32.xlu0 %v492, 1
      %v521 = vpop.permute.xlu0 %520
      %522 = vrot.lane.b32.xlu0 %v493, 1
      %v523 = vpop.permute.xlu0 %522
      %v524 = vsel %vm229, %v521, %v523
      %v525 = vsel %vm229, %v523, %v521
      %526 = vrot.lane.b32.xlu0 %v492, 127
      %v527 = vpop.permute.xlu0 %526
      %528 = vrot.lane.b32.xlu0 %v493, 127
      %v529 = vpop.permute.xlu0 %528
      %v530 = vsel %vm236, %v527, %v529
      %v531 = vsel %vm236, %v529, %v527
      %v532 = vsel %vm211, %v530, %v525
      %v533 = vsel %vm212, %v531, %v524
      %v534 = vsel %vm217, %v525, %v530
      %v535 = vsel %vm218, %v524, %v531
      %v536 = vpack.c.bf16 %v492, %v532
      %v537 = vpack.c.bf16 %v493, %v533
      %v538 = vpack.c.bf16 %v534, %v534
      %v539 = vpack.c.bf16 %v535, %v535
      %540 = vrot.lane.b32.xlu0 %v492, 112
      %v541 = vpop.permute.xlu0 %540
      %542 = vrot.lane.b32.xlu0 %v493, 112
      %v543 = vpop.permute.xlu0 %542
      %v544 = vsel %vm251, %v541, %v543
      %v545 = vsel %vm251, %v543, %v541
      %546 = vrot.lane.b32.xlu0 %v492, 113
      %v547 = vpop.permute.xlu0 %546
      %548 = vrot.lane.b32.xlu0 %v493, 113
      %v549 = vpop.permute.xlu0 %548
      %v550 = vsel %vm258, %v547, %v549
      %v551 = vsel %vm258, %v549, %v547
      %552 = vrot.lane.b32.xlu0 %v492, 111
      %v553 = vpop.permute.xlu0 %552
      %554 = vrot.lane.b32.xlu0 %v493, 111
      %v555 = vpop.permute.xlu0 %554
      %v556 = vsel %vm265, %v553, %v555
      %v557 = vsel %vm265, %v555, %v553
      %v558 = vsel %vm211, %v556, %v550
      %v559 = vsel %vm212, %v557, %v551
      %v560 = vsel %vm217, %v550, %v556
      %v561 = vsel %vm218, %v551, %v557
      %v562 = vpack.c.bf16 %v544, %v558
      %v563 = vpack.c.bf16 %v545, %v559
      %v564 = vpack.c.bf16 %v560, %v560
      %v565 = vpack.c.bf16 %v561, %v561
      %v566 = vsel %vm290, %v562, %v516
      %v567 = vsel %vm291, %v563, %v517
      %v568 = vsel %vm290, %v564, %v518
      %v569 = vsel %vm291, %v565, %v519
      %v570 = vsel %vm310, %v516, %v562
      %v571 = vsel %vm311, %v517, %v563
      %v572 = vsel %vm310, %v518, %v564
      %v573 = vsel %vm311, %v519, %v565
      %v574 = vld [vmem:[%s2] sm:$0xf]
      %s575 = scalar_lea.vmem %s2, 4
      %v576 = vld [vmem:[%s575] sm:$0xf]
      %v578 = vsel %vm319, %v576, 0
      %v581 = vsel %vm323, %v538, 0
      %v584 = vsel %vm323, %v539, 0
      %586 = vmatprep.subr.bf16.mxu0 0
      %587 = vmatpush1.bf16.msra.mxu0 0
      %588 = vmatprep.subr.bf16.mxu0 0
      %589 = vmatpush1.bf16.msra.mxu0 0
      %590 = vmatprep.subr.bf16.mxu0 0
      %591 = vmatpush1.bf16.msra.mxu0 0
      %592 = vmatprep.subr.bf16.mxu0 0
      %593 = vmatpush1.bf16.msra.mxu0 0
      %594 = vmatprep.subr.bf16.mxu0 0
      %595 = vmatpush1.bf16.msra.mxu0 0
      %596 = vmatprep.subr.bf16.mxu0 0
      %597 = vmatpush1.bf16.msra.mxu0 0
      %598 = vmatprep.subr.bf16.mxu0 %v584
      %599 = vmatpush1.bf16.msra.mxu0 %v581
      %600 = vmatprep.subr.bf16.mxu0 %v537
      %601 = vmatpush1.bf16.msra.mxu0 %v536
      %602 = vmatprep.subr.bf16.mxu0 0
      %603 = vmatpush2.bf16.msra.mxu0 0
      %604 = vmatprep.subr.bf16.mxu0 0
      %605 = vmatpush2.bf16.msra.mxu0 0
      %606 = vmatprep.subr.bf16.mxu0 0
      %607 = vmatpush2.bf16.msra.mxu0 0
      %608 = vmatprep.subr.bf16.mxu0 0
      %609 = vmatpush2.bf16.msra.mxu0 0
      %610 = vmatprep.subr.bf16.mxu0 0
      %611 = vmatpush2.bf16.msra.mxu0 0
      %612 = vmatprep.subr.bf16.mxu0 0
      %613 = vmatpush2.bf16.msra.mxu0 0
      %614 = vmatprep.subr.bf16.mxu0 0
      %615 = vmatpush2.bf16.msra.mxu0 0
      %616 = vmatprep.subr.bf16.mxu0 0
      %617 = vmatpush2.bf16.msra.mxu0 0
      %618 = vmatprep.mubr.bf16.mxu0 0
      %619 = vmatmul.mubr.bf16.gmra.mxu0 %v578
      %v620 = vpop.f32.mrf.mxu0
      %v621 = vadd.f32 0.0, %v620
      %v622 = vpop.f32.mrf.mxu0
      %v623 = vadd.f32 0.0, %v622
      %v624 = vpop.f32.mrf.mxu0
      %v625 = vpop.f32.mrf.mxu0
      %626 = vdwg.mxu0
      %v628 = vsel %vm319, %v574, 0
      %v631 = vsel %vm323, %v568, 0
      %v634 = vsel %vm323, %v569, 0
      %636 = vmatprep.subr.bf16.mxu0 0
      %637 = vmatpush1.bf16.msra.mxu0 0
      %638 = vmatprep.subr.bf16.mxu0 0
      %639 = vmatpush1.bf16.msra.mxu0 0
      %640 = vmatprep.subr.bf16.mxu0 0
      %641 = vmatpush1.bf16.msra.mxu0 0
      %642 = vmatprep.subr.bf16.mxu0 0
      %643 = vmatpush1.bf16.msra.mxu0 0
      %644 = vmatprep.subr.bf16.mxu0 0
      %645 = vmatpush1.bf16.msra.mxu0 0
      %646 = vmatprep.subr.bf16.mxu0 0
      %647 = vmatpush1.bf16.msra.mxu0 0
      %648 = vmatprep.subr.bf16.mxu0 %v634
      %649 = vmatpush1.bf16.msra.mxu0 %v631
      %650 = vmatprep.subr.bf16.mxu0 %v567
      %651 = vmatpush1.bf16.msra.mxu0 %v566
      %652 = vmatprep.subr.bf16.mxu0 0
      %653 = vmatpush2.bf16.msra.mxu0 0
      %654 = vmatprep.subr.bf16.mxu0 0
      %655 = vmatpush2.bf16.msra.mxu0 0
      %656 = vmatprep.subr.bf16.mxu0 0
      %657 = vmatpush2.bf16.msra.mxu0 0
      %658 = vmatprep.subr.bf16.mxu0 0
      %659 = vmatpush2.bf16.msra.mxu0 0
      %660 = vmatprep.subr.bf16.mxu0 0
      %661 = vmatpush2.bf16.msra.mxu0 0
      %662 = vmatprep.subr.bf16.mxu0 0
      %663 = vmatpush2.bf16.msra.mxu0 0
      %664 = vmatprep.subr.bf16.mxu0 0
      %665 = vmatpush2.bf16.msra.mxu0 0
      %666 = vmatprep.subr.bf16.mxu0 0
      %667 = vmatpush2.bf16.msra.mxu0 0
      %668 = vmatprep.mubr.bf16.mxu0 0
      %669 = vmatmul.mubr.bf16.gmra.mxu0 %v628
      %v670 = vpop.f32.mrf.mxu0
      %v671 = vadd.f32 %v621, %v670
      %v672 = vpop.f32.mrf.mxu0
      %v673 = vadd.f32 %v623, %v672
      %v674 = vpop.f32.mrf.mxu0
      %v675 = vpop.f32.mrf.mxu0
      %676 = vdwg.mxu0
      %s677 = scalar_lea.vmem %s2, 8
      %v678 = vld [vmem:[%s677] sm:$0xf]
      %v680 = vsel %vm319, %v678, 0
      %v683 = vsel %vm323, %v572, 0
      %v686 = vsel %vm323, %v573, 0
      %688 = vmatprep.subr.bf16.mxu0 0
      %689 = vmatpush1.bf16.msra.mxu0 0
      %690 = vmatprep.subr.bf16.mxu0 0
      %691 = vmatpush1.bf16.msra.mxu0 0
      %692 = vmatprep.subr.bf16.mxu0 0
      %693 = vmatpush1.bf16.msra.mxu0 0
      %694 = vmatprep.subr.bf16.mxu0 0
      %695 = vmatpush1.bf16.msra.mxu0 0
      %696 = vmatprep.subr.bf16.mxu0 0
      %697 = vmatpush1.bf16.msra.mxu0 0
      %698 = vmatprep.subr.bf16.mxu0 0
      %699 = vmatpush1.bf16.msra.mxu0 0
      %700 = vmatprep.subr.bf16.mxu0 %v686
      %701 = vmatpush1.bf16.msra.mxu0 %v683
      %702 = vmatprep.subr.bf16.mxu0 %v571
      %703 = vmatpush1.bf16.msra.mxu0 %v570
      %704 = vmatprep.subr.bf16.mxu0 0
      %705 = vmatpush2.bf16.msra.mxu0 0
      %706 = vmatprep.subr.bf16.mxu0 0
      %707 = vmatpush2.bf16.msra.mxu0 0
      %708 = vmatprep.subr.bf16.mxu0 0
      %709 = vmatpush2.bf16.msra.mxu0 0
      %710 = vmatprep.subr.bf16.mxu0 0
      %711 = vmatpush2.bf16.msra.mxu0 0
      %712 = vmatprep.subr.bf16.mxu0 0
      %713 = vmatpush2.bf16.msra.mxu0 0
      %714 = vmatprep.subr.bf16.mxu0 0
      %715 = vmatpush2.bf16.msra.mxu0 0
      %716 = vmatprep.subr.bf16.mxu0 0
      %717 = vmatpush2.bf16.msra.mxu0 0
      %718 = vmatprep.subr.bf16.mxu0 0
      %719 = vmatpush2.bf16.msra.mxu0 0
      %720 = vmatprep.mubr.bf16.mxu0 0
      %721 = vmatmul.mubr.bf16.gmra.mxu0 %v680
      %v722 = vpop.f32.mrf.mxu0
      %v723 = vadd.f32 0.0, %v722
      %v724 = vpop.f32.mrf.mxu0
      %v725 = vadd.f32 0.0, %v724
      %v726 = vpop.f32.mrf.mxu0
      %v727 = vpop.f32.mrf.mxu0
      %728 = vdwg.mxu0
      %v729 = vadd.f32 %v671, %v723
      %v730 = vadd.f32 %v673, %v725
      %v731 = vadd.f32 %v729, %v730
      %732 = vadd.xlane.f32.xlu0 %v731
      %v733 = vpop.xlane.xlu0 %732
      %v734 = vmul.f32 %v733, %v478
      %v735 = vsub.f32 %v729, %v734
      %v736 = vsub.f32 %v730, %v734
      %v737 = vmul.f32 %v735, %v735
      %v738 = vmul.f32 %v736, %v736
      %v739 = vadd.f32 %v737, %v738
      %740 = vadd.xlane.f32.xlu0 %v739
      %v741 = vpop.xlane.xlu0 %740
      %v742 = vmul.f32 %v741, %v478
      %v743 = vadd.f32 %v742, 1e-05
      %v744 = vrsqrt.pop %v743
      %v745 = vmul.f32 %v735, %v744
      %v746 = vmul.f32 %v736, %v744
      %v747 = vadd.f32 %v745, %v174
      %v748 = vadd.f32 %v746, %v175
      %749 = vst [vmem:[%s170] sm:$0xff] %v747
      %750 = vst [vmem:[%s170 + $0x8] sm:$0xff] %v748
      %p751 = scmp.lt.s32.totalorder %s14, 1
      %s752 = scalar_select %p751, %s14, 1
      %s753 = smul.addr %s752, 2
      %s754 = smul.addr %s753, 8
      %s755 = scalar_lea.vmem %s3, %s754
      // Predicated region
      $region33: #{resblock_pallas.1} parent=31 // pred_check
        %p756 = pneg %p100
      $region34: #{resblock_pallas.1} parent=31 // pred_check_branch
        %758 = sbr.rel (%p756) target = $region36
      $region35: #{resblock_pallas.1} parent=31 // pred_region
        _
      $region36: #{resblock_pallas.1} parent=31 // pred_fallthru
        _
    $region32: #{resblock_pallas.1} parent=5 // pred_fallthru
      _
    %p759 = scmp.le.s32.totalorder 2, %s9
    // Predicated region
    $region37: #{resblock_pallas.1} parent=5 // pred_check
      %p760 = pneg %p759
    $region38: #{resblock_pallas.1} parent=5 // pred_check_branch
      %762 = sbr.rel (%p760) target = $region40
    $region39: #{resblock_pallas.1} parent=5 // pred_region
      %s763 = ssub.s32 %s9, 2
      // Predicated region
      $region41: #{resblock_pallas.1} parent=39 // pred_check
        %p764 = pneg %p106
      $region42: #{resblock_pallas.1} parent=39 // pred_check_branch
        %766 = sbr.rel (%p764) target = $region44
      $region43: #{resblock_pallas.1} parent=39 // pred_region
        %p767 = scmp.lt.s32.totalorder %s15, 1
        %s768 = scalar_select %p767, %s15, 1
        %s769 = smul.addr %s768, 2
        %s770 = smul.addr %s769, 8
        %s771 = scalar_lea.vmem %s3, %s770
      $region44: #{resblock_pallas.1} parent=39 // pred_fallthru
        _
    $region40: #{resblock_pallas.1} parent=5 // pred_fallthru
      _
  $region6: #{resblock_pallas.1} parent=0 // loop_footer
    %s13 = sadd.s32 1, %s9
  $region7: #{resblock_pallas.1} parent=0 // loop_footer_branch
    %8 = sbr.rel target = $region3
  $region8: #{resblock_pallas.1} parent=0 // loop_exit
    _

</llo_original>
